<compile_context>
chip_gen: v7x
topology: tpu7x:2x2x1
jax: 0.10.0
libtpu: 0.0.40
codegen_flags: <defaults>
</compile_context>

<pallas_src>
import jax
import jax.numpy as jnp
from jax.experimental import pallas as pl
from jax.experimental.pallas import tpu as pltpu

_MIB = 1024 * 1024


def _vmem_capacity_bytes():
    """Per-TensorCore VMEM capacity; generation-aware fallback if query fails."""
    try:
        cap = int(getattr(pltpu.get_tpu_info(), "vmem_capacity_bytes", 0) or 0)
        if cap > 0:
            return cap
    except Exception:
        pass
    try:
        kind = jax.devices()[0].device_kind.lower()
    except Exception:
        kind = ""
    if "v7" in kind:
        return 64 * _MIB
    if "v2" in kind or "v3" in kind:
        return 16 * _MIB
    return 128 * _MIB  # v4 / v5e / v5p / v6e


def _choose_tile_rows(n_classes, in_itemsize, vmem_cap):
    """Rows per streamed block, sized by bytes against the full working set."""
    # Per tile row:
    #   * 2 input arrays x 2 pipeline buffers at the input dtype
    #   * ~6 live (rows, C) f32 temporaries inside the kernel body
    #     (review suggested k~4-5; 6 leaves margin for compiler temporaries).
    bytes_per_row = 2 * 2 * n_classes * in_itemsize + 6 * n_classes * 4
    budget = min(int(vmem_cap * 0.35), 40 * _MIB)
    fit = budget // bytes_per_row
    # Cap each streamed input block at ~8 MiB — no measurable benefit past that.
    cap = (8 * _MIB) // max(1, n_classes * in_itemsize)
    rows = max(8, min(fit, cap))
    rows = max(8, (rows // 8) * 8)  # sublane multiple
    return rows
    # TODO(synk): very large class counts (8 rows x C x ~40 B > VMEM budget) would
    # need class-dim tiling with an online/two-pass softmax; not handled here.


def _make_kl_kernel(temperature, tile_b, n_classes, batch, acc_rows,
                    needs_mask, exact_log_target):
    inv_t = 1.0 / float(temperature)
    scale_inputs = float(temperature) != 1.0

    def kl_kernel(s_ref, t_ref, o_ref):
        s = s_ref[...].astype(jnp.float32)
        t = t_ref[...].astype(jnp.float32)
        if scale_inputs:  # skip the multiply entirely when T == 1
            s = s * inv_t
            t = t * inv_t

        # Student log-softmax over the class (last / lane) axis.
        s_sh = s - jnp.max(s, axis=-1, keepdims=True)
        log_p = s_sh - jnp.log(jnp.sum(jnp.exp(s_sh), axis=-1, keepdims=True))

        # Teacher softmax (+1e-7, matching the PyTorch module).
        t_sh = t - jnp.max(t, axis=-1, keepdims=True)
        t_exp = jnp.exp(t_sh)
        t_sum = jnp.sum(t_exp, axis=-1, keepdims=True)
        # EUP vrcp on the (rows, 1) column + one Newton step (~f32 accurate),
        # instead of a full divide chain.
        inv_sum = pl.reciprocal(t_sum, approx=True)
        inv_sum = inv_sum * (2.0 - t_sum * inv_sum)
        q = t_exp * inv_sum + 1e-7

        if exact_log_target:
            log_q = jnp.log(q)            # bit-matches PyTorch (+1e-7 inside log)
        else:
            # EUP saver: teacher log-softmax from values already computed —
            # removes the full-width (rows, C) log (-33% big transcendentals).
            log_q = t_sh - jnp.log(t_sum)

        kl = q * (log_q - log_p)

        if needs_mask:
            # cdiv grid: zero the contribution of out-of-range tail rows
            # (tail-block reads past B are undefined; select never propagates).
            row0 = pl.program_id(0) * tile_b
            rows = row0 + jax.lax.broadcasted_iota(jnp.int32, (tile_b, 1), 0)
            kl = jnp.where(rows < batch, kl, 0.0)

        # (tile_b, C) -> (acc_rows, C) partial sum: pure VALU vreg adds along
        # the sublane-group axis; the store stays lane-dense (full C last dim).
        if acc_rows == 8:
            o_ref[...] = kl.reshape(tile_b // 8, 8, n_classes).sum(axis=0)
        else:
            o_ref[...] = kl.sum(axis=0, keepdims=True)

    return kl_kernel


def kl_loss(output_batch, teacher_outputs, temperature=1.0,
            exact_log_target=True, rows_per_tile=None):
    """Pallas implementation of KL_Loss.forward. Returns a scalar (f32)."""
    assert output_batch.shape == teacher_outputs.shape
    assert output_batch.ndim == 2
    B, C = output_batch.shape

    in_itemsize = max(jnp.dtype(output_batch.dtype).itemsize,
                      jnp.dtype(teacher_outputs.dtype).itemsize)
    vmem_cap = _vmem_capacity_bytes()

    if rows_per_tile is None:
        rows_per_tile = _choose_tile_rows(C, in_itemsize, vmem_cap)
    if B <= rows_per_tile:
        tile_b = B                                  # single whole-array block
    else:
        tile_b = max(8, (rows_per_tile // 8) * 8)   # multiple of 8 (sublanes)

    num_tiles = -(-B // tile_b)                     # cdiv
    needs_mask = (num_tiles * tile_b) != B
    acc_rows = 8 if tile_b % 8 == 0 else 1

    kernel = _make_kl_kernel(temperature, tile_b, C, B, acc_rows,
                             needs_mask, exact_log_target)

    partials = pl.pallas_call(
        kernel,
        out_shape=jax.ShapeDtypeStruct((num_tiles * acc_rows, C), jnp.float32),
        grid_spec=pltpu.PrefetchScalarGridSpec(
            num_scalar_prefetch=0,
            grid=(num_tiles,),
            in_specs=[
                pl.BlockSpec((tile_b, C), lambda i: (i, 0)),
                pl.BlockSpec((tile_b, C), lambda i: (i, 0)),
                # TODO(synk): if a v5e profile shows exposed DMA, sweep
                # pipeline_mode=pl.Buffered(3) on these two specs.
            ],
            out_specs=pl.BlockSpec((acc_rows, C), lambda i: (i, 0)),
        ),
        compiler_params=pltpu.CompilerParams(
            # Each step writes its own output block, so the row-tile axis is
            # truly parallel: megacore-shards on v7x (2 TCs), no-op on v5e/v6e.
            dimension_semantics=("parallel",),
            vmem_limit_bytes=int(vmem_cap * 0.7),   # < 48 MiB on v7x's 64 MiB
        ),
    )(output_batch, teacher_outputs)

    T = float(temperature)
    # Tiny final reduce + 'batchmean' scaling outside the kernel (one-off cost).
    return (T * T / float(B)) * jnp.sum(partials)


def kl_loss_ref(output_batch, teacher_outputs, temperature=1.0):
    """Pure-JAX reference matching the PyTorch module."""
    T = temperature
    log_p = jax.nn.log_softmax(output_batch.astype(jnp.float32) / T, axis=1)
    q = jax.nn.softmax(teacher_outputs.astype(jnp.float32) / T, axis=1) + 1e-7
    B = output_batch.shape[0]
    return (T * T) * jnp.sum(q * (jnp.log(q) - log_p)) / B


if __name__ == "__main__":
    key = jax.random.PRNGKey(0)
    k1, k2, k3, k4 = jax.random.split(key, 4)

    # Small (N, C) logits consistent with the module's forward.
    B, C = 16, 128
    student = jax.random.normal(k1, (B, C), dtype=jnp.float32)
    teacher = jax.random.normal(k2, (B, C), dtype=jnp.float32)

    loss = jax.block_until_ready(kl_loss(student, teacher, temperature=1.0))
    ref = kl_loss_ref(student, teacher, temperature=1.0)
    assert jnp.allclose(loss, ref, rtol=1e-5, atol=2e-5), (loss, ref)

    # Multi-tile cdiv grid with a masked tail tile + temperature scaling.
    B2, C2 = 37, 256
    s2 = jax.random.normal(k3, (B2, C2), dtype=jnp.float32)
    t2 = jax.random.normal(k4, (B2, C2), dtype=jnp.float32)
    loss2 = jax.block_until_ready(
        kl_loss(s2, t2, temperature=3.0, rows_per_tile=16))
    ref2 = kl_loss_ref(s2, t2, temperature=3.0)
    assert jnp.allclose(loss2, ref2, rtol=1e-5, atol=2e-5), (loss2, ref2)

    # Optional EUP-saving teacher-log path (drops the +1e-7 inside the log):
    # numerically O(1e-7)-per-element off the PyTorch reference, so looser tol.
    loss3 = jax.block_until_ready(
        kl_loss(s2, t2, temperature=3.0, rows_per_tile=16,
                exact_log_target=False))
    assert jnp.allclose(loss3, ref2, rtol=2e-3, atol=2e-3), (loss3, ref2)

    print("KERNEL_OK")
</pallas_src>

<mosaic_0001>
module attributes {stable_mosaic.version = 11 : i64} {
  func.func @kl_kernel(%arg0: i32, %arg1: memref<16x128xf32, #tpu.memory_space<vmem>>, %arg2: memref<16x128xf32, #tpu.memory_space<vmem>>, %arg3: memref<8x128xf32, #tpu.memory_space<vmem>>) attributes {dimension_semantics = [#tpu.dimension_semantics<parallel>], iteration_bounds = array<i64: 1>, scalar_prefetch = 0 : i64, scratch_operands = 0 : i64, tpu.core_type = #tpu.core_type<tc>, window_params = [{transform_indices = @transform_0, window_bounds = array<i64: 16, 128>}, {transform_indices = @transform_1, window_bounds = array<i64: 16, 128>}, {transform_indices = @transform_2, window_bounds = array<i64: 8, 128>}]} {
    %c0 = arith.constant 0 : index
    %c0_0 = arith.constant 0 : index
    %0 = vector.load %arg1[%c0, %c0_0] : memref<16x128xf32, #tpu.memory_space<vmem>>, vector<16x128xf32>
    %c0_1 = arith.constant 0 : index
    %c0_2 = arith.constant 0 : index
    %1 = vector.load %arg2[%c0_1, %c0_2] : memref<16x128xf32, #tpu.memory_space<vmem>>, vector<16x128xf32>
    %cst = arith.constant dense<0xFF800000> : vector<16xf32>
    %2 = vector.multi_reduction <maximumf>, %0, %cst [1] : vector<16x128xf32> to vector<16xf32>
    %3 = vector.shape_cast %2 : vector<16xf32> to vector<16x1xf32>
    %4 = vector.broadcast %3 : vector<16x1xf32> to vector<16x128xf32>
    %5 = arith.subf %0, %4 : vector<16x128xf32>
    %6 = math.exp %5 : vector<16x128xf32>
    %cst_3 = arith.constant dense<0.000000e+00> : vector<16xf32>
    %7 = vector.multi_reduction <add>, %6, %cst_3 [1] : vector<16x128xf32> to vector<16xf32>
    %8 = vector.shape_cast %7 : vector<16xf32> to vector<16x1xf32>
    %9 = math.log %8 : vector<16x1xf32>
    %10 = vector.broadcast %9 : vector<16x1xf32> to vector<16x128xf32>
    %11 = arith.subf %5, %10 : vector<16x128xf32>
    %cst_4 = arith.constant dense<0xFF800000> : vector<16xf32>
    %12 = vector.multi_reduction <maximumf>, %1, %cst_4 [1] : vector<16x128xf32> to vector<16xf32>
    %13 = vector.shape_cast %12 : vector<16xf32> to vector<16x1xf32>
    %14 = vector.broadcast %13 : vector<16x1xf32> to vector<16x128xf32>
    %15 = arith.subf %1, %14 : vector<16x128xf32>
    %16 = math.exp %15 : vector<16x128xf32>
    %cst_5 = arith.constant dense<0.000000e+00> : vector<16xf32>
    %17 = vector.multi_reduction <add>, %16, %cst_5 [1] : vector<16x128xf32> to vector<16xf32>
    %18 = vector.shape_cast %17 : vector<16xf32> to vector<16x1xf32>
    %19 = tpu.reciprocal %18 {approx = true} : vector<16x1xf32> -> vector<16x1xf32>
    %20 = arith.mulf %18, %19 : vector<16x1xf32>
    %cst_6 = arith.constant 2.000000e+00 : f32
    %21 = vector.broadcast %cst_6 : f32 to vector<16x1xf32>
    %22 = arith.subf %21, %20 : vector<16x1xf32>
    %23 = arith.mulf %19, %22 : vector<16x1xf32>
    %24 = vector.broadcast %23 : vector<16x1xf32> to vector<16x128xf32>
    %25 = arith.mulf %16, %24 : vector<16x128xf32>
    %cst_7 = arith.constant 1.000000e-07 : f32
    %26 = vector.broadcast %cst_7 : f32 to vector<16x128xf32>
    %27 = arith.addf %25, %26 : vector<16x128xf32>
    %28 = math.log %27 : vector<16x128xf32>
    %29 = arith.subf %28, %11 : vector<16x128xf32>
    %30 = arith.mulf %27, %29 : vector<16x128xf32>
    %31 = vector.shape_cast %30 : vector<16x128xf32> to vector<2x8x128xf32>
    %cst_8 = arith.constant dense<0.000000e+00> : vector<8x128xf32>
    %32 = vector.multi_reduction <add>, %31, %cst_8 [0] : vector<2x8x128xf32> to vector<8x128xf32>
    %c0_9 = arith.constant 0 : index
    %c0_10 = arith.constant 0 : index
    %33 = vector.load %arg3[%c0_9, %c0_10] : memref<8x128xf32, #tpu.memory_space<vmem>>, vector<8x128xf32>
    tpu.vector_store %arg3[%c0_9, %c0_10], %32 {strides = array<i32>} : memref<8x128xf32, #tpu.memory_space<vmem>>, vector<8x128xf32>,
    return
  }
  func.func @transform_0(%arg0: i32) -> (i32, i32) {
    %c0_i32 = arith.constant 0 : i32
    %c0_i32_0 = arith.constant 0 : i32
    return %arg0, %c0_i32 : i32, i32
  }
  func.func @transform_1(%arg0: i32) -> (i32, i32) {
    %c0_i32 = arith.constant 0 : i32
    %c0_i32_0 = arith.constant 0 : i32
    return %arg0, %c0_i32 : i32, i32
  }
  func.func @transform_2(%arg0: i32) -> (i32, i32) {
    %c0_i32 = arith.constant 0 : i32
    %c0_i32_0 = arith.constant 0 : i32
    return %arg0, %c0_i32 : i32, i32
  }
}

</mosaic_0001>

<llo_original>
// kernel: tpu_custom_call.1
$region0: #{tpu_custom_call.1}
  #allocation0 [shape = 'u32[]', space=smem, size = 0x4, offset = 0x4, fixed_abs, tag = 'smem constant byte address 0x4 - core index']
  #allocation1 [shape = 'u32[144,128]{1,0:T(1,128)}', space=vmem, size = 0x12000, scoped, tag = 'internal scratch']
  %s0 = inlined_call_operand.hbm [shape: f32[16,128], index: 0, kind: input, shape index: {}]
  %s1 = inlined_call_operand.hbm [shape: f32[16,128], index: 1, kind: input, shape index: {}]
  %s2 = inlined_call_operand.hbm [shape: f32[8,128], index: 2, kind: output, shape index: {}]
  %s3 = sld [smem:[#allocation0]]
  $region26: #{tpu_custom_call.1} parent=0
    _
  %s5 = ssub.s32 1, %s3
  %s6 = scalar_select 0, %s5, %s3
  $region1: #{tpu_custom_call.1} parent=0
    #allocation2 [shape = 'u8[8192]{0}', space=vmem, size = 0x2000, scoped, tag = 'input window, operand 0, single buffered']
    #allocation3 [shape = 's32[1]{0}', space=sflag, size = 0x4, scoped, tag = 'scoped memory for tpu_custom_call.1']
    #allocation4 [shape = 's32[1]{0}', space=sflag, size = 0x4, scoped, tag = 'scoped memory for tpu_custom_call.1']
    #allocation5 [shape = 'u8[8192]{0}', space=vmem, size = 0x2000, scoped, tag = 'input window, operand 1, single buffered']
    #allocation6 [shape = 's32[1]{0}', space=sflag, size = 0x4, scoped, tag = 'scoped memory for tpu_custom_call.1']
    #allocation7 [shape = 'u8[4096]{0}', space=vmem, size = 0x1000, scoped, tag = 'output window, operand 0, single buffered']
    %7 = vsyncpa [#allocation3], 0
    %8 = vsyncpa [#allocation6], 0
    %9 = vsyncpa [#allocation4], 0
    // Predicated region
    $region2: #{tpu_custom_call.1} parent=1 // pred_check
      _
    $region3: #{tpu_custom_call.1} parent=1 // pred_check_branch
      %11 = sbr.rel (0) target = $region5
    $region4: #{tpu_custom_call.1} parent=1 // pred_region
      %s13 = ssub.s32 256, 256
      %14 = vsyncadd [#allocation3], %s13
      %s15 = sshll.u32 [#allocation2], 4
      %s16 = int_to_ptr.vmem [resolvable:$true] %s15
      %21 = dma.hbm_to_vmem [thread:$0]  %s0, 256, %s16, [#allocation3], 128, 128, 8
    $region5: #{tpu_custom_call.1} parent=1 // pred_fallthru
      _
    // Predicated region
    $region6: #{tpu_custom_call.1} parent=1 // pred_check
      _
    $region7: #{tpu_custom_call.1} parent=1 // pred_check_branch
      %23 = sbr.rel (0) target = $region9
    $region8: #{tpu_custom_call.1} parent=1 // pred_region
      %s25 = ssub.s32 256, 256
      %26 = vsyncadd [#allocation6], %s25
      %s27 = sshll.u32 [#allocation5], 4
      %s28 = int_to_ptr.vmem [resolvable:$true] %s27
      %33 = dma.hbm_to_vmem [thread:$0]  %s1, 256, %s28, [#allocation6], 128, 128, 8
    $region9: #{tpu_custom_call.1} parent=1 // pred_fallthru
      _
    // Predicated region
    $region10: #{tpu_custom_call.1} parent=1 // pred_check
      _
    $region11: #{tpu_custom_call.1} parent=1 // pred_check_branch
      %35 = sbr.rel (0) target = $region13
    $region12: #{tpu_custom_call.1} parent=1 // pred_region
      %36 = dma.done [#allocation3], 256
    $region13: #{tpu_custom_call.1} parent=1 // pred_fallthru
      _
    // Predicated region
    $region14: #{tpu_custom_call.1} parent=1 // pred_check
      _
    $region15: #{tpu_custom_call.1} parent=1 // pred_check_branch
      %38 = sbr.rel (0) target = $region17
    $region16: #{tpu_custom_call.1} parent=1 // pred_region
      %39 = dma.done [#allocation6], 256
    $region17: #{tpu_custom_call.1} parent=1 // pred_fallthru
      _
    %v40 = vld [vmem:[#allocation2] sm:$0xff]
    %v41 = vld [vmem:[#allocation2 + $0x8] sm:$0xff]
    %v42 = vld [vmem:[#allocation5] sm:$0xff]
    %v43 = vld [vmem:[#allocation5 + $0x8] sm:$0xff]
    %44 = vmax.xlane.f32.xlu0 %v40
    %v45 = vpop.xlane.xlu0 %44
    %46 = vmax.xlane.f32.xlu0 %v41
    %v47 = vpop.xlane.xlu0 %46
    %v48 = vsub.f32 %v40, %v45
    %v49 = vsub.f32 %v41, %v47
    %v50 = vmul.f32 %v48, 1.442695
    %v51 = vpow.pop %v50
    %v52 = vmul.f32 %v49, 1.442695
    %v53 = vpow.pop %v52
    %54 = vadd.xlane.f32.xlu0 %v51
    %v55 = vpop.xlane.xlu0 %54
    %56 = vadd.xlane.f32.xlu0 %v53
    %v57 = vpop.xlane.xlu0 %56
    %v58 = vlog2.pop %v55
    %v59 = vmul.f32 %v58, 0.6931472
    %v60 = vlog2.pop %v57
    %v61 = vmul.f32 %v60, 0.6931472
    %v62 = vsub.f32 %v48, %v59
    %v63 = vsub.f32 %v49, %v61
    %64 = vmax.xlane.f32.xlu0 %v42
    %v65 = vpop.xlane.xlu0 %64
    %66 = vmax.xlane.f32.xlu0 %v43
    %v67 = vpop.xlane.xlu0 %66
    %v68 = vsub.f32 %v42, %v65
    %v69 = vsub.f32 %v43, %v67
    %v70 = vmul.f32 %v68, 1.442695
    %v71 = vpow.pop %v70
    %v72 = vmul.f32 %v69, 1.442695
    %v73 = vpow.pop %v72
    %74 = vadd.xlane.f32.xlu0 %v71
    %v75 = vpop.xlane.xlu0 %74
    %76 = vadd.xlane.f32.xlu0 %v73
    %v77 = vpop.xlane.xlu0 %76
    %v78 = vrcp.pop %v75
    %v79 = vrcp.pop %v77
    %v80 = vmul.f32 %v75, %v78
    %v81 = vmul.f32 %v77, %v79
    %v82 = vsub.f32 2.0, %v80
    %v83 = vsub.f32 2.0, %v81
    %v84 = vmul.f32 %v78, %v82
    %v85 = vmul.f32 %v79, %v83
    %v86 = vmul.f32 %v71, %v84
    %v87 = vmul.f32 %v73, %v85
    %v88 = vadd.f32 %v86, 1e-07
    %v89 = vadd.f32 %v87, 1e-07
    %v90 = vlog2.pop %v88
    %v91 = vmul.f32 %v90, 0.6931472
    %v92 = vlog2.pop %v89
    %v93 = vmul.f32 %v92, 0.6931472
    %v94 = vsub.f32 %v91, %v62
    %v95 = vsub.f32 %v93, %v63
    %v96 = vmul.f32 %v88, %v94
    %v97 = vmul.f32 %v89, %v95
    %v98 = vadd.f32 %v96, %v97
    %99 = vst [vmem:[#allocation7] sm:$0xff] %v98
    // Predicated region
    $region18: #{tpu_custom_call.1} parent=1 // pred_check
      _
    $region19: #{tpu_custom_call.1} parent=1 // pred_check_branch
      %101 = sbr.rel (0) target = $region21
    $region20: #{tpu_custom_call.1} parent=1 // pred_region
      %s103 = ssub.s32 128, 128
      %104 = vsyncadd [#allocation4], %s103
      %s106 = sshll.u32 [#allocation7], 4
      %s107 = int_to_ptr.vmem [resolvable:$true] %s106
      %109 = dma.vmem_to_hbm [thread:$0]  %s107, 128, %s2, [#allocation4]
    $region21: #{tpu_custom_call.1} parent=1 // pred_fallthru
      _
    // Predicated region
    $region22: #{tpu_custom_call.1} parent=1 // pred_check
      _
    $region23: #{tpu_custom_call.1} parent=1 // pred_check_branch
      %111 = sbr.rel (0) target = $region25
    $region24: #{tpu_custom_call.1} parent=1 // pred_region
      %112 = dma.done [#allocation4], 128
    $region25: #{tpu_custom_call.1} parent=1 // pred_fallthru
      _
    %113 = vsyncpa [#allocation3], 1
    %114 = vsyncpa [#allocation6], 1
    %115 = vsyncpa [#allocation4], 1

</llo_original>
